<compile_context>
chip_gen: v5e
topology: v5e:2x2
jax: 0.10.0
libtpu: 0.0.40
codegen_flags: <defaults>
</compile_context>

<pallas_src>
import functools

import jax
import jax.numpy as jnp
from jax.experimental import pallas as pl
from jax.experimental.pallas import tpu as pltpu


def _mha_kernel(x_ref, wqkv_ref, wp_ref, bp_ref, o_ref, ctx_ref, *,
                n_heads, head_pad):
    # x_ref block: (1, T, C) bf16 -> one batch element per grid step.
    T = x_ref.shape[1]
    Cp = n_heads * head_pad                      # padded concat-head width

    x = x_ref[0]                                 # (T, C) bf16 MXU operand

    # One fused Q/K/V projection GEMM (weights pre-transposed, per-head
    # zero-padded, attention scale folded into the Q columns in the wrapper).
    # Cast the result to bf16 ONCE; all per-head slices come from this value.
    qkv = jnp.dot(x, wqkv_ref[...],
                  preferred_element_type=jnp.float32).astype(jnp.bfloat16)  # (T, 3*Cp)

    # Causal mask (strictly-upper triangle = future keys).
    row = jax.lax.broadcasted_iota(jnp.int32, (T, T), 0)
    col = jax.lax.broadcasted_iota(jnp.int32, (T, T), 1)
    masked = col > row
    neg = jnp.float32(-1e30)    # large finite: exp() underflows to exactly 0

    # Static unroll over heads: every slice offset is a static multiple of 128
    # and nothing is carried across iterations (temps die at the ctx store).
    for h in range(n_heads):
        lo = h * head_pad
        qh = qkv[:, lo:lo + head_pad]                          # (T, Hp)
        kh = qkv[:, Cp + lo:Cp + lo + head_pad]                # (T, Hp)
        vh = qkv[:, 2 * Cp + lo:2 * Cp + lo + head_pad]        # (T, Hp)

        # Scores: contract the last dims directly (no in-kernel transpose).
        s = jax.lax.dot_general(qh, kh, (((1,), (1,)), ((), ())),
                                preferred_element_type=jnp.float32)   # (T, T)
        s = jnp.where(masked, neg, s)

        # Numerically stable softmax; reciprocal runs on the (idle) EUP slot.
        m = jnp.max(s, axis=-1, keepdims=True)
        e = jnp.exp(s - m)
        p = e * pl.reciprocal(jnp.sum(e, axis=-1, keepdims=True), approx=True)

        ctx = jnp.dot(p.astype(jnp.bfloat16), vh,
                      preferred_element_type=jnp.float32)             # (T, Hp)

        # Store this head's context at its aligned lane offset (bf16).
        ctx_ref[:, lo:lo + head_pad] = ctx.astype(jnp.bfloat16)

    # Single output-projection GEMM with K = Cp (mathematically identical to
    # concat(ctx_h) @ Wp^T since the padded rows/columns are zero), then a
    # f32 bias add and one lane-dense store (E_pad % 128 == 0).
    out = jnp.dot(ctx_ref[...], wp_ref[...],
                  preferred_element_type=jnp.float32)                 # (T, E_pad)
    o_ref[0] = (out + bp_ref[...]).astype(o_ref.dtype)


def multi_head_attention(x, wq, wk, wv, wp, bp, *, n_heads):
    """x: (B, T, C) float32; weights in PyTorch convention W[out, in].

    Returns (B, T, E) float32 with E == wp.shape[0]. MXU operands are bf16
    (f32 accumulation); softmax and bias math stay in float32.
    """
    B, T, C = x.shape
    E = wp.shape[0]
    assert C % n_heads == 0
    head_size = C // n_heads
    scale = float(head_size) ** -0.5

    # 128-lane-aligned per-head width and padded widths.
    head_pad = ((head_size + 127) // 128) * 128
    Cp = n_heads * head_pad
    e_pad = ((E + 127) // 128) * 128

    # Wrapper-side weight prep (would be pre-computed once in real use):
    # transpose to (in, out), split columns per head and zero-pad each head's
    # block to head_pad lanes, fuse Q/K/V, fold the attention scale into Q.
    def _pad_heads(w_t, col_scale=1.0):
        w3 = (w_t * col_scale).reshape(C, n_heads, head_size)
        w3 = jnp.pad(w3, ((0, 0), (0, 0), (0, head_pad - head_size)))
        return w3.reshape(C, Cp)

    wqkv_t = jnp.concatenate(
        [_pad_heads(wq.T, scale), _pad_heads(wk.T), _pad_heads(wv.T)],
        axis=1).astype(jnp.bfloat16)                                   # (C, 3*Cp)

    # Wp^T rows rearranged to the padded per-head layout; columns padded to a
    # 128-lane multiple so the kernel's final store is lane-dense.
    wp3 = wp.T.reshape(n_heads, head_size, E)
    wp3 = jnp.pad(wp3, ((0, 0), (0, head_pad - head_size), (0, e_pad - E)))
    wp_p = wp3.reshape(Cp, e_pad).astype(jnp.bfloat16)                 # (Cp, E_pad)

    bp_row = jnp.pad(bp.astype(jnp.float32).reshape(1, E),
                     ((0, 0), (0, e_pad - E)))                         # (1, E_pad)

    x_bf = x.astype(jnp.bfloat16)

    kernel = functools.partial(_mha_kernel, n_heads=n_heads, head_pad=head_pad)

    out = pl.pallas_call(
        kernel,
        out_shape=jax.ShapeDtypeStruct((B, T, e_pad), jnp.float32),
        grid_spec=pltpu.PrefetchScalarGridSpec(
            num_scalar_prefetch=0,
            grid=(B,),                                    # parallel over batch
            in_specs=[
                pl.BlockSpec((1, T, C), lambda b: (b, 0, 0)),       # x (bf16)
                pl.BlockSpec((C, 3 * Cp), lambda b: (0, 0)),        # fused Wqkv^T (bf16, padded)
                pl.BlockSpec((Cp, e_pad), lambda b: (0, 0)),        # Wp^T (bf16, padded)
                pl.BlockSpec((1, e_pad), lambda b: (0, 0)),         # bias (f32, padded)
            ],
            out_specs=pl.BlockSpec((1, T, e_pad), lambda b: (b, 0, 0)),
            scratch_shapes=[
                pltpu.VMEM((T, Cp), jnp.bfloat16),        # per-head contexts, lane-aligned
            ],
        ),
        compiler_params=pltpu.CompilerParams(
            dimension_semantics=("parallel",),
            # Explicit scoped-VMEM limit: >= every generation's default
            # (raises v5e's 16 MiB); retune / go flash for large T.
            vmem_limit_bytes=32 * 1024 * 1024,
        ),
    )(x_bf, wqkv_t, wp_p, bp_row)

    return out[:, :, :E] if e_pad != E else out


def _reference(x, wq, wk, wv, wp, bp, *, n_heads, mm_dtype=jnp.float32):
    """Pure-JAX reference mirroring the PyTorch forward (eval mode).

    mm_dtype=jnp.float32 -> exact module semantics.
    mm_dtype=jnp.bfloat16 -> mirrors the kernel's MXU-operand precision
    (bf16 operands, f32 accumulation, scale folded into the Q weight).
    """
    B, T, C = x.shape
    Hs = C // n_heads
    scale = float(Hs) ** -0.5
    f32 = jnp.float32
    xc = x.astype(mm_dtype)
    q = jnp.dot(xc, (wq.T * scale).astype(mm_dtype), preferred_element_type=f32)
    k = jnp.dot(xc, wk.T.astype(mm_dtype), preferred_element_type=f32)
    v = jnp.dot(xc, wv.T.astype(mm_dtype), preferred_element_type=f32)
    q = q.reshape(B, T, n_heads, Hs).transpose(0, 2, 1, 3)
    k = k.reshape(B, T, n_heads, Hs).transpose(0, 2, 1, 3)
    v = v.reshape(B, T, n_heads, Hs).transpose(0, 2, 1, 3)
    attn = jnp.einsum("bhtd,bhsd->bhts", q.astype(mm_dtype), k.astype(mm_dtype),
                      preferred_element_type=f32)
    mask = jnp.triu(jnp.ones((T, T), bool), k=1)
    attn = jnp.where(mask, -jnp.inf, attn)
    attn = jax.nn.softmax(attn, axis=-1)
    o = jnp.einsum("bhts,bhsd->bhtd", attn.astype(mm_dtype), v.astype(mm_dtype),
                   preferred_element_type=f32)
    o = o.transpose(0, 2, 1, 3).reshape(B, T, C)
    return jnp.dot(o.astype(mm_dtype), wp.T.astype(mm_dtype),
                   preferred_element_type=f32) + bp


if __name__ == "__main__":
    # Small shapes consistent with the module: n_heads=4, n_embd=C=32, B=2, T=8.
    B, T, C = 2, 8, 32
    n_heads = 4
    n_embd = C

    key = jax.random.PRNGKey(0)
    kx, kq, kk, kv, kp, kb = jax.random.split(key, 6)

    x = jax.random.normal(kx, (B, T, C), jnp.float32)
    # Deterministic synthetic parameters (PyTorch Linear convention: W[out, in]).
    wq = jax.random.normal(kq, (C, C), jnp.float32) * 0.1
    wk = jax.random.normal(kk, (C, C), jnp.float32) * 0.1
    wv = jax.random.normal(kv, (C, C), jnp.float32) * 0.1
    wp = jax.random.normal(kp, (n_embd, n_embd), jnp.float32) * 0.1
    bp = jax.random.normal(kb, (n_embd,), jnp.float32) * 0.1

    out = multi_head_attention(x, wq, wk, wv, wp, bp, n_heads=n_heads)
    out = jax.block_until_ready(out)
    assert out.shape == (B, T, n_embd)
    assert not bool(jnp.any(jnp.isnan(out)))

    # Tight check against a reference that mirrors the kernel's bf16 MXU precision.
    ref_bf16 = _reference(x, wq, wk, wv, wp, bp, n_heads=n_heads, mm_dtype=jnp.bfloat16)
    assert jnp.allclose(out, ref_bf16, atol=1e-2, rtol=1e-2), "mismatch vs bf16-matched reference"

    # Loose sanity check against full-f32 module semantics (bf16 operand noise).
    ref_f32 = _reference(x, wq, wk, wv, wp, bp, n_heads=n_heads, mm_dtype=jnp.float32)
    assert jnp.allclose(out, ref_f32, atol=1e-1, rtol=1e-1), "mismatch vs f32 reference"

    print("KERNEL_OK")
</pallas_src>

<mosaic_0001>
module attributes {stable_mosaic.version = 11 : i64} {
  func.func @_mha_kernel(%arg0: i32, %arg1: memref<1x8x32xbf16, #tpu.memory_space<vmem>>, %arg2: memref<32x1536xbf16, #tpu.memory_space<vmem>>, %arg3: memref<512x128xbf16, #tpu.memory_space<vmem>>, %arg4: memref<1x128xf32, #tpu.memory_space<vmem>>, %arg5: memref<1x8x128xf32, #tpu.memory_space<vmem>>, %arg6: memref<8x512xbf16, #tpu.memory_space<vmem>>) attributes {dimension_semantics = [#tpu.dimension_semantics<parallel>], iteration_bounds = array<i64: 2>, scalar_prefetch = 0 : i64, scratch_operands = 1 : i64, tpu.core_type = #tpu.core_type<tc>, window_params = [{transform_indices = @transform_0, window_bounds = array<i64: 1, 8, 32>}, {pipeline_mode = #tpu.pipeline_mode<synchronous>, transform_indices = @transform_1, window_bounds = array<i64: 32, 1536>}, {pipeline_mode = #tpu.pipeline_mode<synchronous>, transform_indices = @transform_2, window_bounds = array<i64: 512, 128>}, {pipeline_mode = #tpu.pipeline_mode<synchronous>, transform_indices = @transform_3, window_bounds = array<i64: 1, 128>}, {transform_indices = @transform_4, window_bounds = array<i64: 1, 8, 128>}]} {
    %c0 = arith.constant 0 : index
    %c0_0 = arith.constant 0 : index
    %c0_1 = arith.constant 0 : index
    %0 = vector.load %arg1[%c0, %c0_0, %c0_1] : memref<1x8x32xbf16, #tpu.memory_space<vmem>>, vector<1x8x32xbf16>
    %1 = vector.shape_cast %0 : vector<1x8x32xbf16> to vector<8x32xbf16>
    %c0_2 = arith.constant 0 : index
    %c0_3 = arith.constant 0 : index
    %2 = vector.load %arg2[%c0_2, %c0_3] : memref<32x1536xbf16, #tpu.memory_space<vmem>>, vector<32x1536xbf16>
    %cst = arith.constant dense<0.000000e+00> : vector<8x1536xf32>
    %3 = tpu.matmul %1, %2, %cst {dimension_numbers = #tpu.dot_dimension_numbers<[1], [0], [0], [1], [0, 0, 1, 1], [], []>} : vector<8x32xbf16>, vector<32x1536xbf16>, vector<8x1536xf32> -> vector<8x1536xf32>
    %4 = arith.truncf %3 : vector<8x1536xf32> to vector<8x1536xbf16>
    %5 = tpu.iota {dimensions = array<i32: 0>} : vector<8x8xi32>
    %6 = tpu.iota {dimensions = array<i32: 1>} : vector<8x8xi32>
    %7 = arith.cmpi sgt, %6, %5 : vector<8x8xi32>
    %8 = vector.extract_strided_slice %4 {offsets = [0, 0], sizes = [8, 128], strides = [1, 1]} : vector<8x1536xbf16> to vector<8x128xbf16>
    %9 = vector.extract_strided_slice %4 {offsets = [0, 512], sizes = [8, 128], strides = [1, 1]} : vector<8x1536xbf16> to vector<8x128xbf16>
    %10 = vector.extract_strided_slice %4 {offsets = [0, 1024], sizes = [8, 128], strides = [1, 1]} : vector<8x1536xbf16> to vector<8x128xbf16>
    %cst_4 = arith.constant dense<0.000000e+00> : vector<8x8xf32>
    %11 = tpu.matmul %8, %9, %cst_4 {dimension_numbers = #tpu.dot_dimension_numbers<[1], [1], [0], [0], [0, 0, 1, 0], [], []>} : vector<8x128xbf16>, vector<8x128xbf16>, vector<8x8xf32> -> vector<8x8xf32>
    %cst_5 = arith.constant -1.000000e+30 : f32
    %12 = vector.broadcast %cst_5 : f32 to vector<8x8xf32>
    %13 = arith.select %7, %12, %11 : vector<8x8xi1>, vector<8x8xf32>
    %cst_6 = arith.constant dense<0xFF800000> : vector<8xf32>
    %14 = vector.multi_reduction <maximumf>, %13, %cst_6 [1] : vector<8x8xf32> to vector<8xf32>
    %15 = vector.shape_cast %14 : vector<8xf32> to vector<8x1xf32>
    %16 = vector.broadcast %15 : vector<8x1xf32> to vector<8x8xf32>
    %17 = arith.subf %13, %16 : vector<8x8xf32>
    %18 = math.exp %17 : vector<8x8xf32>
    %cst_7 = arith.constant dense<0.000000e+00> : vector<8xf32>
    %19 = vector.multi_reduction <add>, %18, %cst_7 [1] : vector<8x8xf32> to vector<8xf32>
    %20 = vector.shape_cast %19 : vector<8xf32> to vector<8x1xf32>
    %21 = tpu.reciprocal %20 {approx = true} : vector<8x1xf32> -> vector<8x1xf32>
    %22 = vector.broadcast %21 : vector<8x1xf32> to vector<8x8xf32>
    %23 = arith.mulf %18, %22 : vector<8x8xf32>
    %24 = arith.truncf %23 : vector<8x8xf32> to vector<8x8xbf16>
    %cst_8 = arith.constant dense<0.000000e+00> : vector<8x128xf32>
    %25 = tpu.matmul %24, %10, %cst_8 {dimension_numbers = #tpu.dot_dimension_numbers<[1], [0], [0], [1], [0, 0, 1, 1], [], []>} : vector<8x8xbf16>, vector<8x128xbf16>, vector<8x128xf32> -> vector<8x128xf32>
    %26 = arith.truncf %25 : vector<8x128xf32> to vector<8x128xbf16>
    %c0_9 = arith.constant 0 : index
    %c0_10 = arith.constant 0 : index
    %27 = vector.load %arg6[%c0_9, %c0_10] : memref<8x512xbf16, #tpu.memory_space<vmem>>, vector<8x128xbf16>
    tpu.vector_store %arg6[%c0_9, %c0_10], %26 {strides = array<i32>} : memref<8x512xbf16, #tpu.memory_space<vmem>>, vector<8x128xbf16>,
    %28 = vector.extract_strided_slice %4 {offsets = [0, 128], sizes = [8, 128], strides = [1, 1]} : vector<8x1536xbf16> to vector<8x128xbf16>
    %29 = vector.extract_strided_slice %4 {offsets = [0, 640], sizes = [8, 128], strides = [1, 1]} : vector<8x1536xbf16> to vector<8x128xbf16>
    %30 = vector.extract_strided_slice %4 {offsets = [0, 1152], sizes = [8, 128], strides = [1, 1]} : vector<8x1536xbf16> to vector<8x128xbf16>
    %cst_11 = arith.constant dense<0.000000e+00> : vector<8x8xf32>
    %31 = tpu.matmul %28, %29, %cst_11 {dimension_numbers = #tpu.dot_dimension_numbers<[1], [1], [0], [0], [0, 0, 1, 0], [], []>} : vector<8x128xbf16>, vector<8x128xbf16>, vector<8x8xf32> -> vector<8x8xf32>
    %cst_12 = arith.constant -1.000000e+30 : f32
    %32 = vector.broadcast %cst_12 : f32 to vector<8x8xf32>
    %33 = arith.select %7, %32, %31 : vector<8x8xi1>, vector<8x8xf32>
    %cst_13 = arith.constant dense<0xFF800000> : vector<8xf32>
    %34 = vector.multi_reduction <maximumf>, %33, %cst_13 [1] : vector<8x8xf32> to vector<8xf32>
    %35 = vector.shape_cast %34 : vector<8xf32> to vector<8x1xf32>
    %36 = vector.broadcast %35 : vector<8x1xf32> to vector<8x8xf32>
    %37 = arith.subf %33, %36 : vector<8x8xf32>
    %38 = math.exp %37 : vector<8x8xf32>
    %cst_14 = arith.constant dense<0.000000e+00> : vector<8xf32>
    %39 = vector.multi_reduction <add>, %38, %cst_14 [1] : vector<8x8xf32> to vector<8xf32>
    %40 = vector.shape_cast %39 : vector<8xf32> to vector<8x1xf32>
    %41 = tpu.reciprocal %40 {approx = true} : vector<8x1xf32> -> vector<8x1xf32>
    %42 = vector.broadcast %41 : vector<8x1xf32> to vector<8x8xf32>
    %43 = arith.mulf %38, %42 : vector<8x8xf32>
    %44 = arith.truncf %43 : vector<8x8xf32> to vector<8x8xbf16>
    %cst_15 = arith.constant dense<0.000000e+00> : vector<8x128xf32>
    %45 = tpu.matmul %44, %30, %cst_15 {dimension_numbers = #tpu.dot_dimension_numbers<[1], [0], [0], [1], [0, 0, 1, 1], [], []>} : vector<8x8xbf16>, vector<8x128xbf16>, vector<8x128xf32> -> vector<8x128xf32>
    %46 = arith.truncf %45 : vector<8x128xf32> to vector<8x128xbf16>
    %c0_16 = arith.constant 0 : index
    %c128 = arith.constant 128 : index
    %47 = vector.load %arg6[%c0_16, %c128] : memref<8x512xbf16, #tpu.memory_space<vmem>>, vector<8x128xbf16>
    tpu.vector_store %arg6[%c0_16, %c128], %46 {strides = array<i32>} : memref<8x512xbf16, #tpu.memory_space<vmem>>, vector<8x128xbf16>,
    %48 = vector.extract_strided_slice %4 {offsets = [0, 256], sizes = [8, 128], strides = [1, 1]} : vector<8x1536xbf16> to vector<8x128xbf16>
    %49 = vector.extract_strided_slice %4 {offsets = [0, 768], sizes = [8, 128], strides = [1, 1]} : vector<8x1536xbf16> to vector<8x128xbf16>
    %50 = vector.extract_strided_slice %4 {offsets = [0, 1280], sizes = [8, 128], strides = [1, 1]} : vector<8x1536xbf16> to vector<8x128xbf16>
    %cst_17 = arith.constant dense<0.000000e+00> : vector<8x8xf32>
    %51 = tpu.matmul %48, %49, %cst_17 {dimension_numbers = #tpu.dot_dimension_numbers<[1], [1], [0], [0], [0, 0, 1, 0], [], []>} : vector<8x128xbf16>, vector<8x128xbf16>, vector<8x8xf32> -> vector<8x8xf32>
    %cst_18 = arith.constant -1.000000e+30 : f32
    %52 = vector.broadcast %cst_18 : f32 to vector<8x8xf32>
    %53 = arith.select %7, %52, %51 : vector<8x8xi1>, vector<8x8xf32>
    %cst_19 = arith.constant dense<0xFF800000> : vector<8xf32>
    %54 = vector.multi_reduction <maximumf>, %53, %cst_19 [1] : vector<8x8xf32> to vector<8xf32>
    %55 = vector.shape_cast %54 : vector<8xf32> to vector<8x1xf32>
    %56 = vector.broadcast %55 : vector<8x1xf32> to vector<8x8xf32>
    %57 = arith.subf %53, %56 : vector<8x8xf32>
    %58 = math.exp %57 : vector<8x8xf32>
    %cst_20 = arith.constant dense<0.000000e+00> : vector<8xf32>
    %59 = vector.multi_reduction <add>, %58, %cst_20 [1] : vector<8x8xf32> to vector<8xf32>
    %60 = vector.shape_cast %59 : vector<8xf32> to vector<8x1xf32>
    %61 = tpu.reciprocal %60 {approx = true} : vector<8x1xf32> -> vector<8x1xf32>
    %62 = vector.broadcast %61 : vector<8x1xf32> to vector<8x8xf32>
    %63 = arith.mulf %58, %62 : vector<8x8xf32>
    %64 = arith.truncf %63 : vector<8x8xf32> to vector<8x8xbf16>
    %cst_21 = arith.constant dense<0.000000e+00> : vector<8x128xf32>
    %65 = tpu.matmul %64, %50, %cst_21 {dimension_numbers = #tpu.dot_dimension_numbers<[1], [0], [0], [1], [0, 0, 1, 1], [], []>} : vector<8x8xbf16>, vector<8x128xbf16>, vector<8x128xf32> -> vector<8x128xf32>
    %66 = arith.truncf %65 : vector<8x128xf32> to vector<8x128xbf16>
    %c0_22 = arith.constant 0 : index
    %c256 = arith.constant 256 : index
    %67 = vector.load %arg6[%c0_22, %c256] : memref<8x512xbf16, #tpu.memory_space<vmem>>, vector<8x128xbf16>
    tpu.vector_store %arg6[%c0_22, %c256], %66 {strides = array<i32>} : memref<8x512xbf16, #tpu.memory_space<vmem>>, vector<8x128xbf16>,
    %68 = vector.extract_strided_slice %4 {offsets = [0, 384], sizes = [8, 128], strides = [1, 1]} : vector<8x1536xbf16> to vector<8x128xbf16>
    %69 = vector.extract_strided_slice %4 {offsets = [0, 896], sizes = [8, 128], strides = [1, 1]} : vector<8x1536xbf16> to vector<8x128xbf16>
    %70 = vector.extract_strided_slice %4 {offsets = [0, 1408], sizes = [8, 128], strides = [1, 1]} : vector<8x1536xbf16> to vector<8x128xbf16>
    %cst_23 = arith.constant dense<0.000000e+00> : vector<8x8xf32>
    %71 = tpu.matmul %68, %69, %cst_23 {dimension_numbers = #tpu.dot_dimension_numbers<[1], [1], [0], [0], [0, 0, 1, 0], [], []>} : vector<8x128xbf16>, vector<8x128xbf16>, vector<8x8xf32> -> vector<8x8xf32>
    %cst_24 = arith.constant -1.000000e+30 : f32
    %72 = vector.broadcast %cst_24 : f32 to vector<8x8xf32>
    %73 = arith.select %7, %72, %71 : vector<8x8xi1>, vector<8x8xf32>
    %cst_25 = arith.constant dense<0xFF800000> : vector<8xf32>
    %74 = vector.multi_reduction <maximumf>, %73, %cst_25 [1] : vector<8x8xf32> to vector<8xf32>
    %75 = vector.shape_cast %74 : vector<8xf32> to vector<8x1xf32>
    %76 = vector.broadcast %75 : vector<8x1xf32> to vector<8x8xf32>
    %77 = arith.subf %73, %76 : vector<8x8xf32>
    %78 = math.exp %77 : vector<8x8xf32>
    %cst_26 = arith.constant dense<0.000000e+00> : vector<8xf32>
    %79 = vector.multi_reduction <add>, %78, %cst_26 [1] : vector<8x8xf32> to vector<8xf32>
    %80 = vector.shape_cast %79 : vector<8xf32> to vector<8x1xf32>
    %81 = tpu.reciprocal %80 {approx = true} : vector<8x1xf32> -> vector<8x1xf32>
    %82 = vector.broadcast %81 : vector<8x1xf32> to vector<8x8xf32>
    %83 = arith.mulf %78, %82 : vector<8x8xf32>
    %84 = arith.truncf %83 : vector<8x8xf32> to vector<8x8xbf16>
    %cst_27 = arith.constant dense<0.000000e+00> : vector<8x128xf32>
    %85 = tpu.matmul %84, %70, %cst_27 {dimension_numbers = #tpu.dot_dimension_numbers<[1], [0], [0], [1], [0, 0, 1, 1], [], []>} : vector<8x8xbf16>, vector<8x128xbf16>, vector<8x128xf32> -> vector<8x128xf32>
    %86 = arith.truncf %85 : vector<8x128xf32> to vector<8x128xbf16>
    %c0_28 = arith.constant 0 : index
    %c384 = arith.constant 384 : index
    %87 = vector.load %arg6[%c0_28, %c384] : memref<8x512xbf16, #tpu.memory_space<vmem>>, vector<8x128xbf16>
    tpu.vector_store %arg6[%c0_28, %c384], %86 {strides = array<i32>} : memref<8x512xbf16, #tpu.memory_space<vmem>>, vector<8x128xbf16>,
    %c0_29 = arith.constant 0 : index
    %c0_30 = arith.constant 0 : index
    %88 = vector.load %arg6[%c0_29, %c0_30] : memref<8x512xbf16, #tpu.memory_space<vmem>>, vector<8x512xbf16>
    %c0_31 = arith.constant 0 : index
    %c0_32 = arith.constant 0 : index
    %89 = vector.load %arg3[%c0_31, %c0_32] : memref<512x128xbf16, #tpu.memory_space<vmem>>, vector<512x128xbf16>
    %cst_33 = arith.constant dense<0.000000e+00> : vector<8x128xf32>
    %90 = tpu.matmul %88, %89, %cst_33 {dimension_numbers = #tpu.dot_dimension_numbers<[1], [0], [0], [1], [0, 0, 1, 1], [], []>} : vector<8x512xbf16>, vector<512x128xbf16>, vector<8x128xf32> -> vector<8x128xf32>
    %c0_34 = arith.constant 0 : index
    %c0_35 = arith.constant 0 : index
    %91 = vector.load %arg4[%c0_34, %c0_35] : memref<1x128xf32, #tpu.memory_space<vmem>>, vector<1x128xf32>
    %92 = vector.broadcast %91 : vector<1x128xf32> to vector<8x128xf32>
    %93 = arith.addf %90, %92 : vector<8x128xf32>
    %c0_36 = arith.constant 0 : index
    %c0_37 = arith.constant 0 : index
    %c0_38 = arith.constant 0 : index
    %94 = vector.load %arg5[%c0_36, %c0_37, %c0_38] : memref<1x8x128xf32, #tpu.memory_space<vmem>>, vector<1x8x128xf32>
    %95 = vector.shape_cast %94 : vector<1x8x128xf32> to vector<8x128xf32>
    %96 = vector.shape_cast %93 : vector<8x128xf32> to vector<1x8x128xf32>
    tpu.vector_store %arg5[%c0_36, %c0_37, %c0_38], %96 {strides = array<i32>} : memref<1x8x128xf32, #tpu.memory_space<vmem>>, vector<1x8x128xf32>,
    return
  }
  func.func @transform_0(%arg0: i32) -> (i32, i32, i32) {
    %c0_i32 = arith.constant 0 : i32
    %c0_i32_0 = arith.constant 0 : i32
    %c0_i32_1 = arith.constant 0 : i32
    return %arg0, %c0_i32, %c0_i32_0 : i32, i32, i32
  }
  func.func @transform_1(%arg0: i32) -> (i32, i32) {
    %c0_i32 = arith.constant 0 : i32
    %c0_i32_0 = arith.constant 0 : i32
    %c0_i32_1 = arith.constant 0 : i32
    return %c0_i32, %c0_i32_0 : i32, i32
  }
  func.func @transform_2(%arg0: i32) -> (i32, i32) {
    %c0_i32 = arith.constant 0 : i32
    %c0_i32_0 = arith.constant 0 : i32
    %c0_i32_1 = arith.constant 0 : i32
    return %c0_i32, %c0_i32_0 : i32, i32
  }
  func.func @transform_3(%arg0: i32) -> (i32, i32) {
    %c0_i32 = arith.constant 0 : i32
    %c0_i32_0 = arith.constant 0 : i32
    %c0_i32_1 = arith.constant 0 : i32
    return %c0_i32, %c0_i32_0 : i32, i32
  }
  func.func @transform_4(%arg0: i32) -> (i32, i32, i32) {
    %c0_i32 = arith.constant 0 : i32
    %c0_i32_0 = arith.constant 0 : i32
    %c0_i32_1 = arith.constant 0 : i32
    return %arg0, %c0_i32, %c0_i32_0 : i32, i32, i32
  }
}

</mosaic_0001>

<llo_original>
// kernel: tpu_custom_call.1
$region0: #{tpu_custom_call.1}
  #allocation0 [shape = 'u32[]', space=smem, size = 0x4, offset = 0x4, fixed_abs, tag = 'smem constant byte address 0x4 - core index']
  #allocation1 [shape = 'u32[72,128]{1,0:T(1,128)}', space=vmem, size = 0x9000, scoped, tag = 'internal scratch']
  #allocation2 [shape = 'bf16[8,512]{1,0:T(8,128)(2,1)}', space=vmem, size = 0x2000, scoped, tag = 'scratch operand']
  %s0 = inlined_call_operand.hbm [shape: bf16[2,8,32], index: 0, kind: input, shape index: {}]
  %s1 = inlined_call_operand.hbm [shape: bf16[32,1536], index: 1, kind: input, shape index: {}]
  %s2 = inlined_call_operand.hbm [shape: bf16[512,128], index: 2, kind: input, shape index: {}]
  %s3 = inlined_call_operand.vmem [shape: f32[1,128], index: 3, kind: input, shape index: {}]
  %s4 = inlined_call_operand.hbm [shape: f32[2,8,128], index: 4, kind: output, shape index: {}]
  %s5 = sld [smem:[#allocation0]]
  $region61: #{tpu_custom_call.1} parent=0
    _
  %s7 = ssub.s32 1, %s5
  %s8 = scalar_select 0, %s7, %s5
  $region1: #{tpu_custom_call.1} parent=0
    #allocation3 [shape = 'u8[4096]{0}', space=vmem, size = 0x1000, scoped, tag = 'input window, operand 0']
    #allocation4 [shape = 's32[2]{0}', space=sflag, size = 0x8, scoped, tag = 'scoped memory for tpu_custom_call.1']
    #allocation5 [shape = 's32[2]{0}', space=sflag, size = 0x8, scoped, tag = 'scoped memory for tpu_custom_call.1']
    #allocation6 [shape = 'u8[98304]{0}', space=vmem, size = 0x18000, scoped, tag = 'input window, operand 1, single buffered']
    #allocation7 [shape = 's32[1]{0}', space=sflag, size = 0x4, scoped, tag = 'scoped memory for tpu_custom_call.1']
    #allocation8 [shape = 'u8[131072]{0}', space=vmem, size = 0x20000, scoped, tag = 'input window, operand 2, single buffered']
    #allocation9 [shape = 'u8[8192]{0}', space=vmem, size = 0x2000, scoped, tag = 'output window, operand 0']
    %9 = vsyncpa [#allocation4], 0
    %s10 = scalar_lea.sflag [#allocation4], 1
    %11 = vsyncpa %s10, 0
    %12 = vsyncpa [#allocation7], 0
    %13 = vsyncpa [#allocation5], 0
    %s14 = scalar_lea.sflag [#allocation5], 1
    %15 = vsyncpa %s14, 0
    loop: start=0, step=1, limit=4
    $region2: #{tpu_custom_call.1} parent=1 // loop_pre_header
      _
    $region3: #{tpu_custom_call.1} parent=1 // loop_header
      %s17 = sphi 0, %s21
      %p18 = scmp.ge.s32.totalorder %s17, 4
      %s27 = sphi 0, %s29
      %s30 = sphi 0, %s27
      %s31 = sphi 0, %s30
      %s47 = sphi 0, %s31
      %s51 = sphi 0, %s51
      %s53 = sphi 0, %s51
      %s54 = sphi 0, %s53
      %s68 = sphi 0, %s54
      %s72 = sphi 0, %s72
      %s74 = sphi 0, %s72
      %s75 = sphi 0, %s74
      %s89 = sphi 0, %s75
      %s93 = sphi 0, %s93
      %s95 = sphi 0, %s93
      %s96 = sphi 0, %s95
      %s110 = sphi 0, %s96
      %s116 = sphi 0, %s118
      %s119 = sphi 0, %s116
      %s120 = sphi 0, %s119
      %s136 = sphi 0, %s120
    $region4: #{tpu_custom_call.1} parent=1 // loop_header_branch
      %20 = sbr.rel (%p18) target = $region8
    $region5: #{tpu_custom_call.1} parent=1 // loop_body
      %s22 = ssub.s32 %s17, 1
      %s23 = ssub.s32 %s17, 2
      %s24 = sadd.s32 %s17, 1
      %s25 = ssub.s32 %s17, %s24
      %p26 = scmp.eq.s32.totalorder %s25, 0
      %s28 = sadd.s32 %s27, 1
      %s29 = scalar_select %p26, %s27, %s28
      %p32 = pneg %p26
      %p33 = scmp.eq.s32.totalorder %s17, 1
      %p34 = por %p32, %p33
      %p35 = scmp.ne.s32.totalorder %s27, %s30
      %p36 = scmp.eq.s32.totalorder %s17, 0
      %p37 = por %p35, %p36
      %p38 = scmp.ne.s32.totalorder %s27, %s30
      %p39 = scmp.eq.s32.totalorder %s22, 1
      %p40 = por %p38, %p39
      %p41 = scmp.ne.s32.totalorder %s30, %s31
      %p42 = scmp.eq.s32.totalorder %s22, 0
      %p43 = por %p41, %p42
      %p44 = scmp.ne.s32.totalorder %s30, %s31
      %p45 = scmp.eq.s32.totalorder %s23, 1
      %p46 = por %p44, %p45
      %p48 = scmp.ne.s32.totalorder %s31, %s47
      %p49 = scmp.eq.s32.totalorder %s23, 0
      %p50 = por %p48, %p49
      %s52 = sadd.s32 %s51, 1
      %p55 = scmp.eq.s32.totalorder %s17, 1
      %p56 = scmp.ne.s32.totalorder %s51, %s53
      %p57 = scmp.eq.s32.totalorder %s17, 0
      %p58 = por %p56, %p57
      %p59 = scmp.ne.s32.totalorder %s51, %s53
      %p60 = scmp.eq.s32.totalorder %s22, 1
      %p61 = por %p59, %p60
      %p62 = scmp.ne.s32.totalorder %s53, %s54
      %p63 = scmp.eq.s32.totalorder %s22, 0
      %p64 = por %p62, %p63
      %p65 = scmp.ne.s32.totalorder %s53, %s54
      %p66 = scmp.eq.s32.totalorder %s23, 1
      %p67 = por %p65, %p66
      %p69 = scmp.ne.s32.totalorder %s54, %s68
      %p70 = scmp.eq.s32.totalorder %s23, 0
      %p71 = por %p69, %p70
      %s73 = sadd.s32 %s72, 1
      %p76 = scmp.eq.s32.totalorder %s17, 1
      %p77 = scmp.ne.s32.totalorder %s72, %s74
      %p78 = scmp.eq.s32.totalorder %s17, 0
      %p79 = por %p77, %p78
      %p80 = scmp.ne.s32.totalorder %s72, %s74
      %p81 = scmp.eq.s32.totalorder %s22, 1
      %p82 = por %p80, %p81
      %p83 = scmp.ne.s32.totalorder %s74, %s75
      %p84 = scmp.eq.s32.totalorder %s22, 0
      %p85 = por %p83, %p84
      %p86 = scmp.ne.s32.totalorder %s74, %s75
      %p87 = scmp.eq.s32.totalorder %s23, 1
      %p88 = por %p86, %p87
      %p90 = scmp.ne.s32.totalorder %s75, %s89
      %p91 = scmp.eq.s32.totalorder %s23, 0
      %p92 = por %p90, %p91
      %s94 = sadd.s32 %s93, 1
      %p97 = scmp.eq.s32.totalorder %s17, 1
      %p98 = scmp.ne.s32.totalorder %s93, %s95
      %p99 = scmp.eq.s32.totalorder %s17, 0
      %p100 = por %p98, %p99
      %p101 = scmp.ne.s32.totalorder %s93, %s95
      %p102 = scmp.eq.s32.totalorder %s22, 1
      %p103 = por %p101, %p102
      %p104 = scmp.ne.s32.totalorder %s95, %s96
      %p105 = scmp.eq.s32.totalorder %s22, 0
      %p106 = por %p104, %p105
      %p107 = scmp.ne.s32.totalorder %s95, %s96
      %p108 = scmp.eq.s32.totalorder %s23, 1
      %p109 = por %p107, %p108
      %p111 = scmp.ne.s32.totalorder %s96, %s110
      %p112 = scmp.eq.s32.totalorder %s23, 0
      %p113 = por %p111, %p112
      %s114 = ssub.s32 %s17, %s24
      %p115 = scmp.eq.s32.totalorder %s114, 0
      %s117 = sadd.s32 %s116, 1
      %s118 = scalar_select %p115, %s116, %s117
      %p121 = pneg %p115
      %p122 = scmp.eq.s32.totalorder %s17, 1
      %p123 = por %p121, %p122
      %p124 = scmp.ne.s32.totalorder %s116, %s119
      %p125 = scmp.eq.s32.totalorder %s17, 0
      %p126 = por %p124, %p125
      %p127 = scmp.ne.s32.totalorder %s116, %s119
      %p128 = scmp.eq.s32.totalorder %s22, 1
      %p129 = por %p127, %p128
      %p130 = scmp.ne.s32.totalorder %s119, %s120
      %p131 = scmp.eq.s32.totalorder %s22, 0
      %p132 = por %p130, %p131
      %p133 = scmp.ne.s32.totalorder %s119, %s120
      %p134 = scmp.eq.s32.totalorder %s23, 1
      %p135 = por %p133, %p134
      %p137 = scmp.ne.s32.totalorder %s120, %s136
      %p138 = scmp.eq.s32.totalorder %s23, 0
      %p139 = por %p137, %p138
      %p140 = scmp.le.s32.totalorder 1, %s17
      %p141 = scmp.lt.s32.totalorder %s17, 3
      %p142 = pnand %p140, %p141
      %p143 = pneg %p142
      // Predicated region
      $region9: #{tpu_custom_call.1} parent=5 // pred_check
        _
      $region10: #{tpu_custom_call.1} parent=5 // pred_check_branch
        %145 = sbr.rel (%p142) target = $region12
      $region11: #{tpu_custom_call.1} parent=5 // pred_region
        %s146 = ssub.s32 %s17, 1
        // Predicated region
        $region13: #{tpu_custom_call.1} parent=11 // pred_check
          %p147 = pneg %p64
        $region14: #{tpu_custom_call.1} parent=11 // pred_check_branch
          %149 = sbr.rel (%p147) target = $region16
        $region15: #{tpu_custom_call.1} parent=11 // pred_region
          %151 = vsyncadd [#allocation7], 0
          %s152 = sshll.u32 %s1, 4
          %s153 = int_to_ptr.hbm [resolvable:$true] %s152
          %s154 = sshll.u32 [#allocation6], 4
          %s155 = int_to_ptr.vmem [resolvable:$true] %s154
          %160 = dma.hbm_to_vmem [thread:$0]  %s153, 3072, %s155, [#allocation7], 768, 768, 48
        $region16: #{tpu_custom_call.1} parent=11 // pred_fallthru
          _
        // Predicated region
        $region17: #{tpu_custom_call.1} parent=11 // pred_check
          %p161 = pneg %p85
        $region18: #{tpu_custom_call.1} parent=11 // pred_check_branch
          %163 = sbr.rel (%p161) target = $region20
        $region19: #{tpu_custom_call.1} parent=11 // pred_region
          %165 = vsyncadd [#allocation7], 0
          %s166 = sshll.u32 %s2, 4
          %s167 = int_to_ptr.hbm [resolvable:$true] %s166
          %s168 = sshll.u32 [#allocation8], 4
          %s169 = int_to_ptr.vmem [resolvable:$true] %s168
          %174 = dma.hbm_to_vmem [thread:$0]  %s167, 4096, %s169, [#allocation7], 64, 64, 4
        $region20: #{tpu_custom_call.1} parent=11 // pred_fallthru
          _
        // Predicated region
        $region21: #{tpu_custom_call.1} parent=11 // pred_check
          %p175 = pneg %p106
        $region22: #{tpu_custom_call.1} parent=11 // pred_check_branch
          %177 = sbr.rel (%p175) target = $region24
        $region23: #{tpu_custom_call.1} parent=11 // pred_region
          _
        $region24: #{tpu_custom_call.1} parent=11 // pred_fallthru
          _
      $region12: #{tpu_custom_call.1} parent=5 // pred_fallthru
        _
      %p178 = scmp.lt.s32.totalorder %s17, 2
      // Predicated region
      $region25: #{tpu_custom_call.1} parent=5 // pred_check
        %p179 = pneg %p178
      $region26: #{tpu_custom_call.1} parent=5 // pred_check_branch
        %181 = sbr.rel (%p179) target = $region28
      $region27: #{tpu_custom_call.1} parent=5 // pred_region
        // Predicated region
        $region29: #{tpu_custom_call.1} parent=27 // pred_check
          %p182 = pneg %p37
        $region30: #{tpu_custom_call.1} parent=27 // pred_check_branch
          %184 = sbr.rel (%p182) target = $region32
        $region31: #{tpu_custom_call.1} parent=27 // pred_region
          %s185 = sand.u32 %s27, 1
          %s186 = scalar_lea.sflag [#allocation4], %s185
          %s187 = sand.u32 %s27, 1
          %s188 = smul.addr %s187, 4
          %s189 = scalar_lea.vmem [#allocation3], %s188
          %191 = vsyncadd %s186, 0
          %s192 = smul.addr %s17, 4
          %s193 = scalar_lea.hbm %s0, %s192
          %s195 = sshll.u32 %s193, 4
          %s196 = int_to_ptr.hbm [resolvable:$true] %s195
          %s197 = sshll.u32 %s189, 4
          %s198 = int_to_ptr.vmem [resolvable:$true] %s197
          %200 = dma.hbm_to_vmem [thread:$0]  %s196, 64, %s198, %s186
        $region32: #{tpu_custom_call.1} parent=27 // pred_fallthru
          _
      $region28: #{tpu_custom_call.1} parent=5 // pred_fallthru
        _
      %p201 = scmp.le.s32.totalorder 1, %s17
      %p202 = scmp.lt.s32.totalorder %s17, 3
      %p203 = pnand %p201, %p202
      %p204 = pneg %p203
      // Predicated region
      $region33: #{tpu_custom_call.1} parent=5 // pred_check
        _
      $region34: #{tpu_custom_call.1} parent=5 // pred_check_branch
        %206 = sbr.rel (%p203) target = $region36
      $region35: #{tpu_custom_call.1} parent=5 // pred_region
        %s207 = ssub.s32 %s17, 1
        %s208 = sand.u32 %s30, 1
        %s209 = scalar_lea.sflag [#allocation4], %s208
        %s210 = sand.u32 %s30, 1
        %s211 = smul.addr %s210, 4
        %s212 = scalar_lea.vmem [#allocation3], %s211
        // Predicated region
        $region37: #{tpu_custom_call.1} parent=35 // pred_check
          %p213 = pneg %p43
        $region38: #{tpu_custom_call.1} parent=35 // pred_check_branch
          %215 = sbr.rel (%p213) target = $region40
        $region39: #{tpu_custom_call.1} parent=35 // pred_region
          %217 = dma.done %s209, 64
        $region40: #{tpu_custom_call.1} parent=35 // pred_fallthru
          _
        // Predicated region
        $region41: #{tpu_custom_call.1} parent=35 // pred_check
          %p218 = pneg %p64
        $region42: #{tpu_custom_call.1} parent=35 // pred_check_branch
          %220 = sbr.rel (%p218) target = $region44
        $region43: #{tpu_custom_call.1} parent=35 // pred_region
          %222 = dma.done [#allocation7], 3072
        $region44: #{tpu_custom_call.1} parent=35 // pred_fallthru
          _
        // Predicated region
        $region45: #{tpu_custom_call.1} parent=35 // pred_check
          %p223 = pneg %p85
        $region46: #{tpu_custom_call.1} parent=35 // pred_check_branch
          %225 = sbr.rel (%p223) target = $region48
        $region47: #{tpu_custom_call.1} parent=35 // pred_region
          %227 = dma.done [#allocation7], 4096
        $region48: #{tpu_custom_call.1} parent=35 // pred_fallthru
          _
        %s228 = sand.u32 %s30, 1
        %s229 = scalar_lea.sflag [#allocation4], %s228
        %s230 = sand.u32 %s30, 1
        %s231 = smul.addr %s230, 4
        %s232 = scalar_lea.vmem [#allocation3], %s231
        %p233 = pneg %p43
        %p234 = pneg %p40
        %p235 = pneg %p64
        %p236 = pneg %p61
        %p237 = pneg %p85
        %p238 = pneg %p82
        %p239 = pneg %p106
        %p240 = pneg %p103
        %p241 = pneg %p132
        %p242 = pneg %p129
        %s243 = sand.u32 %s119, 1
        %s244 = scalar_lea.sflag [#allocation5], %s243
        %s245 = sand.u32 %s119, 1
        %s246 = smul.addr %s245, 8
        %s247 = scalar_lea.vmem [#allocation9], %s246
        %v249 = vld [vmem:[%s212] sm:$0xf]
        %v250 = vld [vmem:[#allocation6] sm:$0xff]
        %v251 = vld [vmem:[#allocation6 + $0x8] sm:$0xff]
        %v252 = vld [vmem:[#allocation6 + $0x10] sm:$0xff]
        %v253 = vld [vmem:[#allocation6 + $0x18] sm:$0xff]
        %v254 = vld [vmem:[#allocation6 + $0x20] sm:$0xff]
        %v255 = vld [vmem:[#allocation6 + $0x28] sm:$0xff]
        %v256 = vld [vmem:[#allocation6 + $0x30] sm:$0xff]
        %v257 = vld [vmem:[#allocation6 + $0x38] sm:$0xff]
        %v258 = vld [vmem:[#allocation6 + $0x40] sm:$0xff]
        %v259 = vld [vmem:[#allocation6 + $0x48] sm:$0xff]
        %v260 = vld [vmem:[#allocation6 + $0x50] sm:$0xff]
        %v261 = vld [vmem:[#allocation6 + $0x58] sm:$0xff]
        %v262 = vld [vmem:[#allocation6 + $0x60] sm:$0xff]
        %v263 = vld [vmem:[#allocation6 + $0x68] sm:$0xff]
        %v264 = vld [vmem:[#allocation6 + $0x70] sm:$0xff]
        %v265 = vld [vmem:[#allocation6 + $0x78] sm:$0xff]
        %v266 = vld [vmem:[#allocation6 + $0x80] sm:$0xff]
        %v267 = vld [vmem:[#allocation6 + $0x88] sm:$0xff]
        %v268 = vld [vmem:[#allocation6 + $0x90] sm:$0xff]
        %v269 = vld [vmem:[#allocation6 + $0x98] sm:$0xff]
        %v270 = vld [vmem:[#allocation6 + $0xa0] sm:$0xff]
        %v271 = vld [vmem:[#allocation6 + $0xa8] sm:$0xff]
        %v272 = vld [vmem:[#allocation6 + $0xb0] sm:$0xff]
        %v273 = vld [vmem:[#allocation6 + $0xb8] sm:$0xff]
        %v298 = vunpack.c.l.b16 %v250
        %v299 = vunpack.c.h.b16 %v250
        %v300 = vunpack.c.l.b16 %v251
        %v301 = vunpack.c.h.b16 %v251
        %v302 = vunpack.c.l.b16 %v252
        %v303 = vunpack.c.h.b16 %v252
        %v304 = vunpack.c.l.b16 %v253
        %v305 = vunpack.c.h.b16 %v253
        %v306 = vunpack.c.l.b16 %v254
        %v307 = vunpack.c.h.b16 %v254
        %v308 = vunpack.c.l.b16 %v255
        %v309 = vunpack.c.h.b16 %v255
        %v310 = vunpack.c.l.b16 %v256
        %v311 = vunpack.c.h.b16 %v256
        %v312 = vunpack.c.l.b16 %v257
        %v313 = vunpack.c.h.b16 %v257
        %v314 = vunpack.c.l.b16 %v258
        %v315 = vunpack.c.h.b16 %v258
        %v316 = vunpack.c.l.b16 %v259
        %v317 = vunpack.c.h.b16 %v259
        %v318 = vunpack.c.l.b16 %v260
        %v319 = vunpack.c.h.b16 %v260
        %v320 = vunpack.c.l.b16 %v261
        %v321 = vunpack.c.h.b16 %v261
        %v322 = vunpack.c.l.b16 %v262
        %v323 = vunpack.c.h.b16 %v262
        %v324 = vunpack.c.l.b16 %v263
        %v325 = vunpack.c.h.b16 %v263
        %v326 = vunpack.c.l.b16 %v264
        %v327 = vunpack.c.h.b16 %v264
        %v328 = vunpack.c.l.b16 %v265
        %v329 = vunpack.c.h.b16 %v265
        %v330 = vunpack.c.l.b16 %v266
        %v331 = vunpack.c.h.b16 %v266
        %v332 = vunpack.c.l.b16 %v267
        %v333 = vunpack.c.h.b16 %v267
        %v334 = vunpack.c.l.b16 %v268
        %v335 = vunpack.c.h.b16 %v268
        %v336 = vunpack.c.l.b16 %v269
        %v337 = vunpack.c.h.b16 %v269
        %v338 = vunpack.c.l.b16 %v270
        %v339 = vunpack.c.h.b16 %v270
        %v340 = vunpack.c.l.b16 %v271
        %v341 = vunpack.c.h.b16 %v271
        %v342 = vunpack.c.l.b16 %v272
        %v343 = vunpack.c.h.b16 %v272
        %v344 = vunpack.c.l.b16 %v273
        %v345 = vunpack.c.h.b16 %v273
        %v346 = vpack.c.b16 %v310, %v298
        %v347 = vpack.c.b16 %v311, %v299
        %v348 = vpack.c.b16 %v312, %v300
        %v349 = vpack.c.b16 %v313, %v301
        %v350 = vpack.c.b16 %v314, %v302
        %v351 = vpack.c.b16 %v315, %v303
        %v352 = vpack.c.b16 %v316, %v304
        %v353 = vpack.c.b16 %v317, %v305
        %v354 = vpack.c.b16 %v318, %v306
        %v355 = vpack.c.b16 %v319, %v307
        %v356 = vpack.c.b16 %v320, %v308
        %v357 = vpack.c.b16 %v321, %v309
        %v358 = vpack.c.b16 %v334, %v322
        %v359 = vpack.c.b16 %v335, %v323
        %v360 = vpack.c.b16 %v336, %v324
        %v361 = vpack.c.b16 %v337, %v325
        %v362 = vpack.c.b16 %v338, %v326
        %v363 = vpack.c.b16 %v339, %v327
        %v364 = vpack.c.b16 %v340, %v328
        %v365 = vpack.c.b16 %v341, %v329
        %v366 = vpack.c.b16 %v342, %v330
        %v367 = vpack.c.b16 %v343, %v331
        %v368 = vpack.c.b16 %v344, %v332
        %v369 = vpack.c.b16 %v345, %v333
        %vm394 = vcmask 261120
        %v396 = vsel %vm394, %v249, 0
        %398 = vmatpush.bf16.msra.mxu0 0
        %399 = vmatpush.bf16.msra.mxu0 0
        %400 = vmatpush.bf16.msra.mxu0 0
        %401 = vmatpush.bf16.msra.mxu0 0
        %402 = vmatpush.bf16.msra.mxu0 0
        %403 = vmatpush.bf16.msra.mxu0 0
        %404 = vmatpush.bf16.msra.mxu0 %v358
        %405 = vmatpush.bf16.msra.mxu0 %v346
        %406 = vmatmul.bf16.gmra.mxu0 %v396
        %v407 = vpop.f32.mrf.mxu0
        %v408 = vadd.f32 0.0, %v407
        %v409 = vpop.f32.mrf.mxu0
        %410 = vdwg.mxu0
        %411 = vmatpush.bf16.msra.mxu0 0
        %412 = vmatpush.bf16.msra.mxu0 0
        %413 = vmatpush.bf16.msra.mxu0 0
        %414 = vmatpush.bf16.msra.mxu0 0
        %415 = vmatpush.bf16.msra.mxu0 0
        %416 = vmatpush.bf16.msra.mxu0 0
        %417 = vmatpush.bf16.msra.mxu0 %v359
        %418 = vmatpush.bf16.msra.mxu0 %v347
        %419 = vmatmul.bf16.gmra.mxu0 %v396
        %v420 = vpop.f32.mrf.mxu0
        %v421 = vadd.f32 0.0, %v420
        %v422 = vpop.f32.mrf.mxu0
        %423 = vdwg.mxu0
        %424 = vmatpush.bf16.msra.mxu0 0
        %425 = vmatpush.bf16.msra.mxu0 0
        %426 = vmatpush.bf16.msra.mxu0 0
        %427 = vmatpush.bf16.msra.mxu0 0
        %428 = vmatpush.bf16.msra.mxu0 0
        %429 = vmatpush.bf16.msra.mxu0 0
        %430 = vmatpush.bf16.msra.mxu0 %v360
        %431 = vmatpush.bf16.msra.mxu0 %v348
        %432 = vmatmul.bf16.gmra.mxu0 %v396
        %v433 = vpop.f32.mrf.mxu0
        %v434 = vadd.f32 0.0, %v433
        %v435 = vpop.f32.mrf.mxu0
        %436 = vdwg.mxu0
        %437 = vmatpush.bf16.msra.mxu0 0
        %438 = vmatpush.bf16.msra.mxu0 0
        %439 = vmatpush.bf16.msra.mxu0 0
        %440 = vmatpush.bf16.msra.mxu0 0
        %441 = vmatpush.bf16.msra.mxu0 0
        %442 = vmatpush.bf16.msra.mxu0 0
        %443 = vmatpush.bf16.msra.mxu0 %v361
        %444 = vmatpush.bf16.msra.mxu0 %v349
        %445 = vmatmul.bf16.gmra.mxu0 %v396
        %v446 = vpop.f32.mrf.mxu0
        %v447 = vadd.f32 0.0, %v446
        %v448 = vpop.f32.mrf.mxu0
        %449 = vdwg.mxu0
        %450 = vmatpush.bf16.msra.mxu0 0
        %451 = vmatpush.bf16.msra.mxu0 0
        %452 = vmatpush.bf16.msra.mxu0 0
        %453 = vmatpush.bf16.msra.mxu0 0
        %454 = vmatpush.bf16.msra.mxu0 0
        %455 = vmatpush.bf16.msra.mxu0 0
        %456 = vmatpush.bf16.msra.mxu0 %v362
        %457 = vmatpush.bf16.msra.mxu0 %v350
        %458 = vmatmul.bf16.gmra.mxu0 %v396
        %v459 = vpop.f32.mrf.mxu0
        %v460 = vadd.f32 0.0, %v459
        %v461 = vpop.f32.mrf.mxu0
        %462 = vdwg.mxu0
        %463 = vmatpush.bf16.msra.mxu0 0
        %464 = vmatpush.bf16.msra.mxu0 0
        %465 = vmatpush.bf16.msra.mxu0 0
        %466 = vmatpush.bf16.msra.mxu0 0
        %467 = vmatpush.bf16.msra.mxu0 0
        %468 = vmatpush.bf16.msra.mxu0 0
        %469 = vmatpush.bf16.msra.mxu0 %v363
        %470 = vmatpush.bf16.msra.mxu0 %v351
        %471 = vmatmul.bf16.gmra.mxu0 %v396
        %v472 = vpop.f32.mrf.mxu0
        %v473 = vadd.f32 0.0, %v472
        %v474 = vpop.f32.mrf.mxu0
        %475 = vdwg.mxu0
        %476 = vmatpush.bf16.msra.mxu0 0
        %477 = vmatpush.bf16.msra.mxu0 0
        %478 = vmatpush.bf16.msra.mxu0 0
        %479 = vmatpush.bf16.msra.mxu0 0
        %480 = vmatpush.bf16.msra.mxu0 0
        %481 = vmatpush.bf16.msra.mxu0 0
        %482 = vmatpush.bf16.msra.mxu0 %v364
        %483 = vmatpush.bf16.msra.mxu0 %v352
        %484 = vmatmul.bf16.gmra.mxu0 %v396
        %v485 = vpop.f32.mrf.mxu0
        %v486 = vadd.f32 0.0, %v485
        %v487 = vpop.f32.mrf.mxu0
        %488 = vdwg.mxu0
        %489 = vmatpush.bf16.msra.mxu0 0
        %490 = vmatpush.bf16.msra.mxu0 0
        %491 = vmatpush.bf16.msra.mxu0 0
        %492 = vmatpush.bf16.msra.mxu0 0
        %493 = vmatpush.bf16.msra.mxu0 0
        %494 = vmatpush.bf16.msra.mxu0 0
        %495 = vmatpush.bf16.msra.mxu0 %v365
        %496 = vmatpush.bf16.msra.mxu0 %v353
        %497 = vmatmul.bf16.gmra.mxu0 %v396
        %v498 = vpop.f32.mrf.mxu0
        %v499 = vadd.f32 0.0, %v498
        %v500 = vpop.f32.mrf.mxu0
        %501 = vdwg.mxu0
        %502 = vmatpush.bf16.msra.mxu0 0
        %503 = vmatpush.bf16.msra.mxu0 0
        %504 = vmatpush.bf16.msra.mxu0 0
        %505 = vmatpush.bf16.msra.mxu0 0
        %506 = vmatpush.bf16.msra.mxu0 0
        %507 = vmatpush.bf16.msra.mxu0 0
        %508 = vmatpush.bf16.msra.mxu0 %v366
        %509 = vmatpush.bf16.msra.mxu0 %v354
        %510 = vmatmul.bf16.gmra.mxu0 %v396
        %v511 = vpop.f32.mrf.mxu0
        %v512 = vadd.f32 0.0, %v511
        %v513 = vpop.f32.mrf.mxu0
        %514 = vdwg.mxu0
        %515 = vmatpush.bf16.msra.mxu0 0
        %516 = vmatpush.bf16.msra.mxu0 0
        %517 = vmatpush.bf16.msra.mxu0 0
        %518 = vmatpush.bf16.msra.mxu0 0
        %519 = vmatpush.bf16.msra.mxu0 0
        %520 = vmatpush.bf16.msra.mxu0 0
        %521 = vmatpush.bf16.msra.mxu0 %v367
        %522 = vmatpush.bf16.msra.mxu0 %v355
        %523 = vmatmul.bf16.gmra.mxu0 %v396
        %v524 = vpop.f32.mrf.mxu0
        %v525 = vadd.f32 0.0, %v524
        %v526 = vpop.f32.mrf.mxu0
        %527 = vdwg.mxu0
        %528 = vmatpush.bf16.msra.mxu0 0
        %529 = vmatpush.bf16.msra.mxu0 0
        %530 = vmatpush.bf16.msra.mxu0 0
        %531 = vmatpush.bf16.msra.mxu0 0
        %532 = vmatpush.bf16.msra.mxu0 0
        %533 = vmatpush.bf16.msra.mxu0 0
        %534 = vmatpush.bf16.msra.mxu0 %v368
        %535 = vmatpush.bf16.msra.mxu0 %v356
        %536 = vmatmul.bf16.gmra.mxu0 %v396
        %v537 = vpop.f32.mrf.mxu0
        %v538 = vadd.f32 0.0, %v537
        %v539 = vpop.f32.mrf.mxu0
        %540 = vdwg.mxu0
        %541 = vmatpush.bf16.msra.mxu0 0
        %542 = vmatpush.bf16.msra.mxu0 0
        %543 = vmatpush.bf16.msra.mxu0 0
        %544 = vmatpush.bf16.msra.mxu0 0
        %545 = vmatpush.bf16.msra.mxu0 0
        %546 = vmatpush.bf16.msra.mxu0 0
        %547 = vmatpush.bf16.msra.mxu0 %v369
        %548 = vmatpush.bf16.msra.mxu0 %v357
        %549 = vmatmul.bf16.gmra.mxu0 %v396
        %v550 = vpop.f32.mrf.mxu0
        %v551 = vadd.f32 0.0, %v550
        %v552 = vpop.f32.mrf.mxu0
        %553 = vdwg.mxu0
        %v554 = vpack.c.bf16 %v421, %v408
        %v555 = vpack.c.bf16 %v447, %v434
        %v556 = vpack.c.bf16 %v473, %v460
        %v557 = vpack.c.bf16 %v499, %v486
        %v558 = vpack.c.bf16 %v525, %v512
        %v559 = vpack.c.bf16 %v551, %v538
        %v560 = vlaneseq
        %v561 = vshrl.u32 %v560, 7
        %v562 = vlaneseq
        %v563 = vand.u32 %v562, 127
        %vm564 = vcmp.gt.s32.totalorder %v563, %v561
        %565 = vmatpush.bf16.xpose.msra.mxu0 0
        %566 = vmatpush.bf16.xpose.msra.mxu0 0
        %567 = vmatpush.bf16.xpose.msra.mxu0 0
        %568 = vmatpush.bf16.xpose.msra.mxu0 0
        %569 = vmatpush.bf16.xpose.msra.mxu0 0
        %570 = vmatpush.bf16.xpose.msra.mxu0 0
        %571 = vmatpush.bf16.xpose.msra.mxu0 0
        %572 = vmatpush.bf16.xpose.msra.mxu0 %v556
        %573 = vmatmul.bf16.gmra.mxu0 %v554
        %v574 = vpop.f32.mrf.mxu0
        %v575 = vadd.f32 0.0, %v574
        %v576 = vpop.f32.mrf.mxu0
        %577 = vdwg.mxu0
        %v578 = vsel %vm564, -1e+30, %v575
        %vm579 = vcmask 64512
        %v580 = vsel %vm579, %v578, -inf
        %581 = vmax.xlane.f32.xlu0 %v580
        %v582 = vpop.xlane.xlu0 %581
        %v583 = vsub.f32 %v578, %v582
        %v584 = vmul.f32 %v583, 1.442695
        %v585 = vpow.pop %v584
        %v586 = vsel %vm579, %v585, 0.0
        %587 = vadd.xlane.f32.xlu0 %v586
        %v588 = vpop.xlane.xlu0 %587
        %v589 = vrcp.pop %v588
        %v590 = vmul.f32 %v585, %v589
        %v591 = vpack.c.bf16 %v590, %v590
        %v593 = vsel %vm579, %v591, 0
        %vm595 = vcmask 1043456
        %v597 = vsel %vm595, %v558, 0
        %599 = vmatpush.bf16.msra.mxu0 0
        %600 = vmatpush.bf16.msra.mxu0 0
        %601 = vmatpush.bf16.msra.mxu0 0
        %602 = vmatpush.bf16.msra.mxu0 0
        %603 = vmatpush.bf16.msra.mxu0 0
        %604 = vmatpush.bf16.msra.mxu0 0
        %605 = vmatpush.bf16.msra.mxu0 0
        %606 = vmatpush.bf16.msra.mxu0 %v597
        %607 = vmatmul.bf16.gmra.mxu0 %v593
        %v608 = vpop.f32.mrf.mxu0
        %v609 = vadd.f32 0.0, %v608
        %v610 = vpop.f32.mrf.mxu0
        %611 = vdwg.mxu0
        %v612 = vpack.c.bf16 %v609, %v609
        %613 = vst [vmem:[#allocation2] sm:$0xf] %v612
        %v615 = vunpack.c.h.b16 %v554
        %v616 = vpack.c.b16 %v615, %v615
        %v619 = vunpack.c.h.b16 %v556
        %v620 = vpack.c.b16 %v619, %v619
        %622 = vmatpush.bf16.xpose.msra.mxu0 0
        %623 = vmatpush.bf16.xpose.msra.mxu0 0
        %624 = vmatpush.bf16.xpose.msra.mxu0 0
        %625 = vmatpush.bf16.xpose.msra.mxu0 0
        %626 = vmatpush.bf16.xpose.msra.mxu0 0
        %627 = vmatpush.bf16.xpose.msra.mxu0 0
        %628 = vmatpush.bf16.xpose.msra.mxu0 0
        %629 = vmatpush.bf16.xpose.msra.mxu0 %v620
        %630 = vmatmul.bf16.gmra.mxu0 %v616
        %v631 = vpop.f32.mrf.mxu0
        %v632 = vadd.f32 0.0, %v631
        %v633 = vpop.f32.mrf.mxu0
        %634 = vdwg.mxu0
        %v635 = vsel %vm564, -1e+30, %v632
        %v636 = vsel %vm579, %v635, -inf
        %637 = vmax.xlane.f32.xlu0 %v636
        %v638 = vpop.xlane.xlu0 %637
        %v639 = vsub.f32 %v635, %v638
        %v640 = vmul.f32 %v639, 1.442695
        %v641 = vpow.pop %v640
        %v642 = vsel %vm579, %v641, 0.0
        %643 = vadd.xlane.f32.xlu0 %v642
        %v644 = vpop.xlane.xlu0 %643
        %v645 = vrcp.pop %v644
        %v646 = vmul.f32 %v641, %v645
        %v647 = vpack.c.bf16 %v646, %v646
        %v649 = vunpack.c.h.b16 %v558
        %v650 = vpack.c.b16 %v649, %v649
        %v652 = vsel %vm579, %v647, 0
        %v655 = vsel %vm595, %v650, 0
        %657 = vmatpush.bf16.msra.mxu0 0
        %658 = vmatpush.bf16.msra.mxu0 0
        %659 = vmatpush.bf16.msra.mxu0 0
        %660 = vmatpush.bf16.msra.mxu0 0
        %661 = vmatpush.bf16.msra.mxu0 0
        %662 = vmatpush.bf16.msra.mxu0 0
        %663 = vmatpush.bf16.msra.mxu0 0
        %664 = vmatpush.bf16.msra.mxu0 %v655
        %665 = vmatmul.bf16.gmra.mxu0 %v652
        %v666 = vpop.f32.mrf.mxu0
        %v667 = vadd.f32 0.0, %v666
        %v668 = vpop.f32.mrf.mxu0
        %669 = vdwg.mxu0
        %v670 = vpack.c.bf16 %v667, %v667
        %671 = vst [vmem:[#allocation2 + $0x4] sm:$0xf] %v670
        %672 = vmatpush.bf16.xpose.msra.mxu0 0
        %673 = vmatpush.bf16.xpose.msra.mxu0 0
        %674 = vmatpush.bf16.xpose.msra.mxu0 0
        %675 = vmatpush.bf16.xpose.msra.mxu0 0
        %676 = vmatpush.bf16.xpose.msra.mxu0 0
        %677 = vmatpush.bf16.xpose.msra.mxu0 0
        %678 = vmatpush.bf16.xpose.msra.mxu0 0
        %679 = vmatpush.bf16.xpose.msra.mxu0 %v557
        %680 = vmatmul.bf16.gmra.mxu0 %v555
        %v681 = vpop.f32.mrf.mxu0
        %v682 = vadd.f32 0.0, %v681
        %v683 = vpop.f32.mrf.mxu0
        %684 = vdwg.mxu0
        %v685 = vsel %vm564, -1e+30, %v682
        %v686 = vsel %vm579, %v685, -inf
        %687 = vmax.xlane.f32.xlu0 %v686
        %v688 = vpop.xlane.xlu0 %687
        %v689 = vsub.f32 %v685, %v688
        %v690 = vmul.f32 %v689, 1.442695
        %v691 = vpow.pop %v690
        %v692 = vsel %vm579, %v691, 0.0
        %693 = vadd.xlane.f32.xlu0 %v692
        %v694 = vpop.xlane.xlu0 %693
        %v695 = vrcp.pop %v694
        %v696 = vmul.f32 %v691, %v695
        %v697 = vpack.c.bf16 %v696, %v696
        %v699 = vsel %vm579, %v697, 0
        %v702 = vsel %vm595, %v559, 0
        %704 = vmatpush.bf16.msra.mxu0 0
        %705 = vmatpush.bf16.msra.mxu0 0
        %706 = vmatpush.bf16.msra.mxu0 0
        %707 = vmatpush.bf16.msra.mxu0 0
        %708 = vmatpush.bf16.msra.mxu0 0
        %709 = vmatpush.bf16.msra.mxu0 0
        %710 = vmatpush.bf16.msra.mxu0 0
        %711 = vmatpush.bf16.msra.mxu0 %v702
        %712 = vmatmul.bf16.gmra.mxu0 %v699
        %v713 = vpop.f32.mrf.mxu0
        %v714 = vadd.f32 0.0, %v713
        %v715 = vpop.f32.mrf.mxu0
        %716 = vdwg.mxu0
        %v717 = vpack.c.bf16 %v714, %v714
        %718 = vst [vmem:[#allocation2 + $0x8] sm:$0xf] %v717
        %v720 = vunpack.c.h.b16 %v555
        %v721 = vpack.c.b16 %v720, %v720
        %v724 = vunpack.c.h.b16 %v557
        %v725 = vpack.c.b16 %v724, %v724
        %727 = vmatpush.bf16.xpose.msra.mxu0 0
        %728 = vmatpush.bf16.xpose.msra.mxu0 0
        %729 = vmatpush.bf16.xpose.msra.mxu0 0
        %730 = vmatpush.bf16.xpose.msra.mxu0 0
        %731 = vmatpush.bf16.xpose.msra.mxu0 0
        %732 = vmatpush.bf16.xpose.msra.mxu0 0
        %733 = vmatpush.bf16.xpose.msra.mxu0 0
        %734 = vmatpush.bf16.xpose.msra.mxu0 %v725
        %735 = vmatmul.bf16.gmra.mxu0 %v721
        %v736 = vpop.f32.mrf.mxu0
        %v737 = vadd.f32 0.0, %v736
        %v738 = vpop.f32.mrf.mxu0
        %739 = vdwg.mxu0
        %v740 = vsel %vm564, -1e+30, %v737
        %v741 = vsel %vm579, %v740, -inf
        %742 = vmax.xlane.f32.xlu0 %v741
        %v743 = vpop.xlane.xlu0 %742
        %v744 = vsub.f32 %v740, %v743
        %v745 = vmul.f32 %v744, 1.442695
        %v746 = vpow.pop %v745
        %v747 = vsel %vm579, %v746, 0.0
        %748 = vadd.xlane.f32.xlu0 %v747
        %v749 = vpop.xlane.xlu0 %748
        %v750 = vrcp.pop %v749
        %v751 = vmul.f32 %v746, %v750
        %v752 = vpack.c.bf16 %v751, %v751
        %v754 = vunpack.c.h.b16 %v559
        %v755 = vpack.c.b16 %v754, %v754
        %v757 = vsel %vm579, %v752, 0
        %v760 = vsel %vm595, %v755, 0
        %762 = vmatpush.bf16.msra.mxu0 0
        %763 = vmatpush.bf16.msra.mxu0 0
        %764 = vmatpush.bf16.msra.mxu0 0
        %765 = vmatpush.bf16.msra.mxu0 0
        %766 = vmatpush.bf16.msra.mxu0 0
        %767 = vmatpush.bf16.msra.mxu0 0
        %768 = vmatpush.bf16.msra.mxu0 0
        %769 = vmatpush.bf16.msra.mxu0 %v760
        %770 = vmatmul.bf16.gmra.mxu0 %v757
        %v771 = vpop.f32.mrf.mxu0
        %v772 = vadd.f32 0.0, %v771
        %v773 = vpop.f32.mrf.mxu0
        %774 = vdwg.mxu0
        %v775 = vpack.c.bf16 %v772, %v772
        %776 = vst [vmem:[#allocation2 + $0xc] sm:$0xf] %v775
        %v777 = vld [vmem:[#allocation2] sm:$0xff]
        %v778 = vld [vmem:[#allocation2 + $0x8] sm:$0xff]
        %v779 = vld [vmem:[#allocation8] sm:$0xf]
        %v780 = vld [vmem:[#allocation8 + $0x4] sm:$0xf]
        %v781 = vld [vmem:[#allocation8 + $0x8] sm:$0xf]
        %v782 = vld [vmem:[#allocation8 + $0xc] sm:$0xf]
        %v783 = vld [vmem:[#allocation8 + $0x10] sm:$0xf]
        %v784 = vld [vmem:[#allocation8 + $0x14] sm:$0xf]
        %v785 = vld [vmem:[#allocation8 + $0x18] sm:$0xf]
        %v786 = vld [vmem:[#allocation8 + $0x1c] sm:$0xf]
        %v787 = vld [vmem:[#allocation8 + $0x20] sm:$0xf]
        %v788 = vld [vmem:[#allocation8 + $0x24] sm:$0xf]
        %v789 = vld [vmem:[#allocation8 + $0x28] sm:$0xf]
        %v790 = vld [vmem:[#allocation8 + $0x2c] sm:$0xf]
        %v791 = vld [vmem:[#allocation8 + $0x30] sm:$0xf]
        %v792 = vld [vmem:[#allocation8 + $0x34] sm:$0xf]
        %v793 = vld [vmem:[#allocation8 + $0x38] sm:$0xf]
        %v794 = vld [vmem:[#allocation8 + $0x3c] sm:$0xf]
        %v795 = vld [vmem:[#allocation8 + $0x40] sm:$0xf]
        %v796 = vld [vmem:[#allocation8 + $0x44] sm:$0xf]
        %v797 = vld [vmem:[#allocation8 + $0x48] sm:$0xf]
        %v798 = vld [vmem:[#allocation8 + $0x4c] sm:$0xf]
        %v799 = vld [vmem:[#allocation8 + $0x50] sm:$0xf]
        %v800 = vld [vmem:[#allocation8 + $0x54] sm:$0xf]
        %v801 = vld [vmem:[#allocation8 + $0x58] sm:$0xf]
        %v802 = vld [vmem:[#allocation8 + $0x5c] sm:$0xf]
        %v803 = vld [vmem:[#allocation8 + $0x60] sm:$0xf]
        %v804 = vld [vmem:[#allocation8 + $0x64] sm:$0xf]
        %v805 = vld [vmem:[#allocation8 + $0x68] sm:$0xf]
        %v806 = vld [vmem:[#allocation8 + $0x6c] sm:$0xf]
        %v807 = vld [vmem:[#allocation8 + $0x70] sm:$0xf]
        %v808 = vld [vmem:[#allocation8 + $0x74] sm:$0xf]
        %v809 = vld [vmem:[#allocation8 + $0x78] sm:$0xf]
        %v810 = vld [vmem:[#allocation8 + $0x7c] sm:$0xf]
        %v811 = vld [vmem:[#allocation8 + $0x80] sm:$0xf]
        %v812 = vld [vmem:[#allocation8 + $0x84] sm:$0xf]
        %v813 = vld [vmem:[#allocation8 + $0x88] sm:$0xf]
        %v814 = vld [vmem:[#allocation8 + $0x8c] sm:$0xf]
        %v815 = vld [vmem:[#allocation8 + $0x90] sm:$0xf]
        %v816 = vld [vmem:[#allocation8 + $0x94] sm:$0xf]
        %v817 = vld [vmem:[#allocation8 + $0x98] sm:$0xf]
        %v818 = vld [vmem:[#allocation8 + $0x9c] sm:$0xf]
        %v819 = vld [vmem:[#allocation8 + $0xa0] sm:$0xf]
        %v820 = vld [vmem:[#allocation8 + $0xa4] sm:$0xf]
        %v821 = vld [vmem:[#allocation8 + $0xa8] sm:$0xf]
        %v822 = vld [vmem:[#allocation8 + $0xac] sm:$0xf]
        %v823 = vld [vmem:[#allocation8 + $0xb0] sm:$0xf]
        %v824 = vld [vmem:[#allocation8 + $0xb4] sm:$0xf]
        %v825 = vld [vmem:[#allocation8 + $0xb8] sm:$0xf]
        %v826 = vld [vmem:[#allocation8 + $0xbc] sm:$0xf]
        %v827 = vld [vmem:[#allocation8 + $0xc0] sm:$0xf]
        %v828 = vld [vmem:[#allocation8 + $0xc4] sm:$0xf]
        %v829 = vld [vmem:[#allocation8 + $0xc8] sm:$0xf]
        %v830 = vld [vmem:[#allocation8 + $0xcc] sm:$0xf]
        %v831 = vld [vmem:[#allocation8 + $0xd0] sm:$0xf]
        %v832 = vld [vmem:[#allocation8 + $0xd4] sm:$0xf]
        %v833 = vld [vmem:[#allocation8 + $0xd8] sm:$0xf]
        %v834 = vld [vmem:[#allocation8 + $0xdc] sm:$0xf]
        %v835 = vld [vmem:[#allocation8 + $0xe0] sm:$0xf]
        %v836 = vld [vmem:[#allocation8 + $0xe4] sm:$0xf]
        %v837 = vld [vmem:[#allocation8 + $0xe8] sm:$0xf]
        %v838 = vld [vmem:[#allocation8 + $0xec] sm:$0xf]
        %v839 = vld [vmem:[#allocation8 + $0xf0] sm:$0xf]
        %v840 = vld [vmem:[#allocation8 + $0xf4] sm:$0xf]
        %v841 = vld [vmem:[#allocation8 + $0xf8] sm:$0xf]
        %v842 = vld [vmem:[#allocation8 + $0xfc] sm:$0xf]
        %v843 = vld [vmem:[%s3] sm:$0x1]
        %v845 = vperm.slane %v843, 0
        %v849 = vunpack.c.l.b16 %v777
        %v850 = vunpack.c.h.b16 %v777
        %v851 = vunpack.c.l.b16 %v778
        %v852 = vunpack.c.h.b16 %v778
        %v853 = vpack.c.b16 %v849, %v849
        %v854 = vpack.c.b16 %v850, %v850
        %v855 = vpack.c.b16 %v851, %v851
        %v856 = vpack.c.b16 %v852, %v852
        %v925 = vunpack.c.l.b16 %v779
        %v926 = vunpack.c.l.b16 %v780
        %v927 = vunpack.c.l.b16 %v781
        %v928 = vunpack.c.l.b16 %v782
        %v929 = vunpack.c.l.b16 %v783
        %v930 = vunpack.c.l.b16 %v784
        %v931 = vunpack.c.l.b16 %v785
        %v932 = vunpack.c.l.b16 %v786
        %v933 = vunpack.c.l.b16 %v787
        %v934 = vunpack.c.l.b16 %v788
        %v935 = vunpack.c.l.b16 %v789
        %v936 = vunpack.c.l.b16 %v790
        %v937 = vunpack.c.l.b16 %v791
        %v938 = vunpack.c.l.b16 %v792
        %v939 = vunpack.c.l.b16 %v793
        %v940 = vunpack.c.l.b16 %v794
        %v941 = vunpack.c.l.b16 %v795
        %v942 = vunpack.c.l.b16 %v796
        %v943 = vunpack.c.l.b16 %v797
        %v944 = vunpack.c.l.b16 %v798
        %v945 = vunpack.c.l.b16 %v799
        %v946 = vunpack.c.l.b16 %v800
        %v947 = vunpack.c.l.b16 %v801
        %v948 = vunpack.c.l.b16 %v802
        %v949 = vunpack.c.l.b16 %v803
        %v950 = vunpack.c.l.b16 %v804
        %v951 = vunpack.c.l.b16 %v805
        %v952 = vunpack.c.l.b16 %v806
        %v953 = vunpack.c.l.b16 %v807
        %v954 = vunpack.c.l.b16 %v808
        %v955 = vunpack.c.l.b16 %v809
        %v956 = vunpack.c.l.b16 %v810
        %v957 = vunpack.c.l.b16 %v811
        %v958 = vunpack.c.l.b16 %v812
        %v959 = vunpack.c.l.b16 %v813
        %v960 = vunpack.c.l.b16 %v814
        %v961 = vunpack.c.l.b16 %v815
        %v962 = vunpack.c.l.b16 %v816
        %v963 = vunpack.c.l.b16 %v817
        %v964 = vunpack.c.l.b16 %v818
        %v965 = vunpack.c.l.b16 %v819
        %v966 = vunpack.c.l.b16 %v820
        %v967 = vunpack.c.l.b16 %v821
        %v968 = vunpack.c.l.b16 %v822
        %v969 = vunpack.c.l.b16 %v823
        %v970 = vunpack.c.l.b16 %v824
        %v971 = vunpack.c.l.b16 %v825
        %v972 = vunpack.c.l.b16 %v826
        %v973 = vunpack.c.l.b16 %v827
        %v974 = vunpack.c.l.b16 %v828
        %v975 = vunpack.c.l.b16 %v829
        %v976 = vunpack.c.l.b16 %v830
        %v977 = vunpack.c.l.b16 %v831
        %v978 = vunpack.c.l.b16 %v832
        %v979 = vunpack.c.l.b16 %v833
        %v980 = vunpack.c.l.b16 %v834
        %v981 = vunpack.c.l.b16 %v835
        %v982 = vunpack.c.l.b16 %v836
        %v983 = vunpack.c.l.b16 %v837
        %v984 = vunpack.c.l.b16 %v838
        %v985 = vunpack.c.l.b16 %v839
        %v986 = vunpack.c.l.b16 %v840
        %v987 = vunpack.c.l.b16 %v841
        %v988 = vunpack.c.l.b16 %v842
        %v989 = vpack.c.b16 %v926, %v925
        %v990 = vpack.c.b16 %v928, %v927
        %v991 = vpack.c.b16 %v930, %v929
        %v992 = vpack.c.b16 %v932, %v931
        %v993 = vpack.c.b16 %v934, %v933
        %v994 = vpack.c.b16 %v936, %v935
        %v995 = vpack.c.b16 %v938, %v937
        %v996 = vpack.c.b16 %v940, %v939
        %v997 = vpack.c.b16 %v942, %v941
        %v998 = vpack.c.b16 %v944, %v943
        %v999 = vpack.c.b16 %v946, %v945
        %v1000 = vpack.c.b16 %v948, %v947
        %v1001 = vpack.c.b16 %v950, %v949
        %v1002 = vpack.c.b16 %v952, %v951
        %v1003 = vpack.c.b16 %v954, %v953
        %v1004 = vpack.c.b16 %v956, %v955
        %v1005 = vpack.c.b16 %v958, %v957
        %v1006 = vpack.c.b16 %v960, %v959
        %v1007 = vpack.c.b16 %v962, %v961
        %v1008 = vpack.c.b16 %v964, %v963
        %v1009 = vpack.c.b16 %v966, %v965
        %v1010 = vpack.c.b16 %v968, %v967
        %v1011 = vpack.c.b16 %v970, %v969
        %v1012 = vpack.c.b16 %v972, %v971
        %v1013 = vpack.c.b16 %v974, %v973
        %v1014 = vpack.c.b16 %v976, %v975
        %v1015 = vpack.c.b16 %v978, %v977
        %v1016 = vpack.c.b16 %v980, %v979
        %v1017 = vpack.c.b16 %v982, %v981
        %v1018 = vpack.c.b16 %v984, %v983
        %v1019 = vpack.c.b16 %v986, %v985
        %v1020 = vpack.c.b16 %v988, %v987
        %1053 = vmatpush.bf16.msra.mxu0 %v996
        %1054 = vmatpush.bf16.msra.mxu0 %v995
        %1055 = vmatpush.bf16.msra.mxu0 %v994
        %1056 = vmatpush.bf16.msra.mxu0 %v993
        %1057 = vmatpush.bf16.msra.mxu0 %v992
        %1058 = vmatpush.bf16.msra.mxu0 %v991
        %1059 = vmatpush.bf16.msra.mxu0 %v990
        %1060 = vmatpush.bf16.msra.mxu0 %v989
        %1061 = vmatmul.bf16.gmra.mxu0 %v853
        %v1062 = vpop.f32.mrf.mxu0
        %v1063 = vadd.f32 %v845, %v1062
        %v1064 = vpop.f32.mrf.mxu0
        %1065 = vdwg.mxu0
        %1066 = vmatpush.bf16.msra.mxu0 %v1004
        %1067 = vmatpush.bf16.msra.mxu0 %v1003
        %1068 = vmatpush.bf16.msra.mxu0 %v1002
        %1069 = vmatpush.bf16.msra.mxu0 %v1001
        %1070 = vmatpush.bf16.msra.mxu0 %v1000
        %1071 = vmatpush.bf16.msra.mxu0 %v999
        %1072 = vmatpush.bf16.msra.mxu0 %v998
        %1073 = vmatpush.bf16.msra.mxu0 %v997
        %1074 = vmatmul.bf16.gmra.mxu0 %v854
        %v1075 = vpop.f32.mrf.mxu0
        %v1076 = vadd.f32 %v1063, %v1075
        %v1077 = vpop.f32.mrf.mxu0
        %1078 = vdwg.mxu0
        %1079 = vmatpush.bf16.msra.mxu0 %v1012
        %1080 = vmatpush.bf16.msra.mxu0 %v1011
        %1081 = vmatpush.bf16.msra.mxu0 %v1010
        %1082 = vmatpush.bf16.msra.mxu0 %v1009
        %1083 = vmatpush.bf16.msra.mxu0 %v1008
        %1084 = vmatpush.bf16.msra.mxu0 %v1007
        %1085 = vmatpush.bf16.msra.mxu0 %v1006
        %1086 = vmatpush.bf16.msra.mxu0 %v1005
        %1087 = vmatmul.bf16.gmra.mxu0 %v855
        %v1088 = vpop.f32.mrf.mxu0
        %v1089 = vadd.f32 %v1076, %v1088
        %v1090 = vpop.f32.mrf.mxu0
        %1091 = vdwg.mxu0
        %1092 = vmatpush.bf16.msra.mxu0 %v1020
        %1093 = vmatpush.bf16.msra.mxu0 %v1019
        %1094 = vmatpush.bf16.msra.mxu0 %v1018
        %1095 = vmatpush.bf16.msra.mxu0 %v1017
        %1096 = vmatpush.bf16.msra.mxu0 %v1016
        %1097 = vmatpush.bf16.msra.mxu0 %v1015
        %1098 = vmatpush.bf16.msra.mxu0 %v1014
        %1099 = vmatpush.bf16.msra.mxu0 %v1013
        %1100 = vmatmul.bf16.gmra.mxu0 %v856
        %v1101 = vpop.f32.mrf.mxu0
        %v1102 = vadd.f32 %v1089, %v1101
        %v1103 = vpop.f32.mrf.mxu0
        %1104 = vdwg.mxu0
        %1105 = vst [vmem:[%s247] sm:$0xff] %v1102
        %s1106 = sand.u32 %s119, 1
        %s1107 = scalar_lea.sflag [#allocation5], %s1106
        %s1108 = sand.u32 %s119, 1
        %s1109 = smul.addr %s1108, 8
        %s1110 = scalar_lea.vmem [#allocation9], %s1109
        // Predicated region
        $region49: #{tpu_custom_call.1} parent=35 // pred_check
          %p1111 = pneg %p129
        $region50: #{tpu_custom_call.1} parent=35 // pred_check_branch
          %1113 = sbr.rel (%p1111) target = $region52
        $region51: #{tpu_custom_call.1} parent=35 // pred_region
          %1115 = vsyncadd %s1107, 0
          %s1116 = smul.addr %s22, 8
          %s1117 = scalar_lea.hbm %s4, %s1116
          %s1119 = sshll.u32 %s1110, 4
          %s1120 = int_to_ptr.vmem [resolvable:$true] %s1119
          %s1121 = sshll.u32 %s1117, 4
          %s1122 = int_to_ptr.hbm [resolvable:$true] %s1121
          %1124 = dma.vmem_to_hbm [thread:$0]  %s1120, 128, %s1122, %s1107
        $region52: #{tpu_custom_call.1} parent=35 // pred_fallthru
          _
      $region36: #{tpu_custom_call.1} parent=5 // pred_fallthru
        _
      %p1125 = scmp.le.s32.totalorder 2, %s17
      // Predicated region
      $region53: #{tpu_custom_call.1} parent=5 // pred_check
        %p1126 = pneg %p1125
      $region54: #{tpu_custom_call.1} parent=5 // pred_check_branch
        %1128 = sbr.rel (%p1126) target = $region56
      $region55: #{tpu_custom_call.1} parent=5 // pred_region
        %s1129 = ssub.s32 %s17, 2
        // Predicated region
        $region57: #{tpu_custom_call.1} parent=55 // pred_check
          %p1130 = pneg %p135
        $region58: #{tpu_custom_call.1} parent=55 // pred_check_branch
          %1132 = sbr.rel (%p1130) target = $region60
        $region59: #{tpu_custom_call.1} parent=55 // pred_region
          %s1133 = sand.u32 %s120, 1
          %s1134 = scalar_lea.sflag [#allocation5], %s1133
          %s1135 = sand.u32 %s120, 1
          %s1136 = smul.addr %s1135, 8
          %s1137 = scalar_lea.vmem [#allocation9], %s1136
          %1139 = dma.done %s1134, 128
        $region60: #{tpu_custom_call.1} parent=55 // pred_fallthru
          _
      $region56: #{tpu_custom_call.1} parent=5 // pred_fallthru
        _
    $region6: #{tpu_custom_call.1} parent=1 // loop_footer
      %s21 = sadd.s32 1, %s17
    $region7: #{tpu_custom_call.1} parent=1 // loop_footer_branch
      %16 = sbr.rel target = $region3
    $region8: #{tpu_custom_call.1} parent=1 // loop_exit
      _
    %1140 = vsyncpa [#allocation4], 1
    %s1141 = scalar_lea.sflag [#allocation4], 1
    %1142 = vsyncpa %s1141, 1
    %1143 = vsyncpa [#allocation7], 1
    %1144 = vsyncpa [#allocation5], 1
    %s1145 = scalar_lea.sflag [#allocation5], 1
    %1146 = vsyncpa %s1145, 1

</llo_original>
